<compile_context>
chip_gen: v6e
topology: v6e:2x2x1
jax: 0.10.0
libtpu: 0.0.40
codegen_flags: <defaults>
</compile_context>

<pallas_src>
import functools

import jax
import jax.numpy as jnp
from jax.experimental import pallas as pl
from jax.experimental.pallas import tpu as pltpu

_EPS = 1e-5  # nn.LayerNorm default


def _round_up(x, m):
    return ((x + m - 1) // m) * m


# ----------------------------------------------------------------------------
# Fused kernel: linear1 + LayerNorm + PReLU + linear2 + PReLU + linear3
# ----------------------------------------------------------------------------
def _deep_qnet_kernel(alpha_ref, x_ref, w1_ref, b1_ref, g_ref, beta_ref,
                      w2_ref, b2_ref, w3_ref, b3_ref, o_ref,
                      *, hidden, n_pad, eps):
    a = alpha_ref[0]                                    # PReLU scalar (SMEM)

    # --- linear1: cast x in-kernel, bf16 operands, f32 MXU accumulation ------
    x = x_ref[...].astype(jnp.bfloat16)
    h = jnp.dot(x, w1_ref[...], preferred_element_type=jnp.float32)
    h = h + b1_ref[...]                                 # (TM, Hp) + (1, Hp)

    # --- LayerNorm (two-pass, padded-column corrected) ------------------------
    # Padded hidden columns of h are exactly zero (zero w1 cols / zero b1), so
    # mean over the real `hidden` columns is sum(h)/hidden.  After centering,
    # each padded column contributes mean^2 to the sum of squares; subtract
    # that excess exactly so var matches the unpadded two-pass formula.
    inv_h = 1.0 / hidden
    mean = jnp.sum(h, axis=-1, keepdims=True) * inv_h
    c = h - mean
    var = (jnp.sum(c * c, axis=-1, keepdims=True) - n_pad * mean * mean) * inv_h
    inv = jax.lax.rsqrt(var + eps)
    # gamma/beta are zero in the padded columns -> padded lanes stay 0.
    h = c * inv * g_ref[...] + beta_ref[...]

    # --- PReLU ----------------------------------------------------------------
    h = jnp.where(h > 0, h, a * h)

    # --- linear2 + PReLU -------------------------------------------------------
    h2 = jnp.dot(h.astype(jnp.bfloat16), w2_ref[...],
                 preferred_element_type=jnp.float32)
    h2 = h2 + b2_ref[...]
    h2 = jnp.where(h2 > 0, h2, a * h2)

    # --- linear3 (no activation), real output width ----------------------------
    out = jnp.dot(h2.astype(jnp.bfloat16), w3_ref[...],
                  preferred_element_type=jnp.float32)
    o_ref[...] = (out + b3_ref[...]).astype(o_ref.dtype)


# ----------------------------------------------------------------------------
# Parameter prep: pad hidden dim to a 128 multiple once, cast matmul weights
# to bf16.  Input dim (D) and output dim keep their real widths.
# ----------------------------------------------------------------------------
def prepare_params(p, input_size, hidden_size, output_size):
    Hp = _round_up(hidden_size, 128)

    def pad2(w, r, c):
        return jnp.zeros((r, c), jnp.float32).at[: w.shape[0], : w.shape[1]].set(w)

    def pad_row(v, n):
        return jnp.zeros((1, n), jnp.float32).at[0, : v.shape[0]].set(v)

    return {
        "w1": pad2(p["w1"], input_size, Hp).astype(jnp.bfloat16),   # (D, Hp)
        "b1": pad_row(p["b1"], Hp),
        "gamma": pad_row(p["gamma"], Hp),
        "beta": pad_row(p["beta"], Hp),
        "w2": pad2(p["w2"], Hp, Hp).astype(jnp.bfloat16),           # (Hp, Hp)
        "b2": pad_row(p["b2"], Hp),
        "w3": pad2(p["w3"], Hp, output_size).astype(jnp.bfloat16),  # (Hp, O) real width
        "b3": pad_row(p["b3"], output_size),                        # (1, O)
        "alpha": p["alpha"].astype(jnp.float32).reshape(1),
    }


# ----------------------------------------------------------------------------
# Forward wrapper
# ----------------------------------------------------------------------------
@functools.partial(jax.jit, static_argnames=("hidden_size", "output_size", "block_m"))
def deep_qnet_forward(prepped, x, *, hidden_size, output_size, block_m=1024):
    M, D = x.shape
    Hp = prepped["w2"].shape[0]
    O = output_size

    # --- M tiling (no explicit M padding; partial last block is masked) -------
    if M < 16:
        tm = M                                   # full-extent block (legal)
    else:
        # >=2 grid steps for big batches so the "parallel" axis can shard
        # across v7x's two TensorCores; 16-aligned for bf16 sublane packing.
        tm = max(16, min(block_m, _round_up(pl.cdiv(M, 2), 16)))
    grid = (pl.cdiv(M, tm),)

    const = lambda shape: pl.BlockSpec(shape, lambda i: (0, 0))  # VMEM-resident

    weight_bytes = sum(int(v.size) * v.dtype.itemsize for v in prepped.values())
    cost = pl.CostEstimate(
        flops=2 * M * (D * Hp + Hp * Hp + Hp * O),
        transcendentals=M,                                    # one rsqrt per row
        bytes_accessed=M * D * 4 + M * O * 4 + weight_bytes,
    )

    out = pl.pallas_call(
        functools.partial(_deep_qnet_kernel,
                          hidden=float(hidden_size),
                          n_pad=float(Hp - hidden_size),
                          eps=_EPS),
        out_shape=jax.ShapeDtypeStruct((M, O), jnp.float32),
        grid=grid,
        in_specs=[
            pl.BlockSpec(memory_space=pltpu.MemorySpace.SMEM),  # alpha (scalar)
            pl.BlockSpec((tm, D), lambda i: (i, 0)),            # x tile (native f32)
            const((D, Hp)),                                     # w1
            const((1, Hp)),                                     # b1
            const((1, Hp)),                                     # gamma
            const((1, Hp)),                                     # beta
            const((Hp, Hp)),                                    # w2
            const((1, Hp)),                                     # b2
            const((Hp, O)),                                     # w3 (real out width)
            const((1, O)),                                      # b3
        ],
        out_specs=pl.BlockSpec((tm, O), lambda i: (i, 0)),
        compiler_params=pltpu.CompilerParams(
            dimension_semantics=("parallel",)),
        cost_estimate=cost,
    )(prepped["alpha"], x, prepped["w1"], prepped["b1"], prepped["gamma"],
      prepped["beta"], prepped["w2"], prepped["b2"], prepped["w3"], prepped["b3"])

    return out


# ----------------------------------------------------------------------------
# Param init (PyTorch-style defaults: LayerNorm gamma=1/beta=0, PReLU a=0.25)
# ----------------------------------------------------------------------------
def init_params(key, input_size, hidden_size, output_size):
    ks = jax.random.split(key, 6)
    s1 = 1.0 / (input_size ** 0.5)
    s2 = 1.0 / (hidden_size ** 0.5)
    return {
        "w1": jax.random.uniform(ks[0], (input_size, hidden_size), jnp.float32, -s1, s1),
        "b1": jax.random.uniform(ks[1], (hidden_size,), jnp.float32, -s1, s1),
        "gamma": jnp.ones((hidden_size,), jnp.float32),
        "beta": jnp.zeros((hidden_size,), jnp.float32),
        "w2": jax.random.uniform(ks[2], (hidden_size, hidden_size), jnp.float32, -s2, s2),
        "b2": jax.random.uniform(ks[3], (hidden_size,), jnp.float32, -s2, s2),
        "w3": jax.random.uniform(ks[4], (hidden_size, output_size), jnp.float32, -s2, s2),
        "b3": jax.random.uniform(ks[5], (output_size,), jnp.float32, -s2, s2),
        "alpha": jnp.array([0.25], jnp.float32),
    }


# ----------------------------------------------------------------------------
# Pure-JAX f32 reference (mirrors Deep_QNet.forward)
# ----------------------------------------------------------------------------
def deep_qnet_reference(p, x):
    a = p["alpha"][0]
    h = x @ p["w1"] + p["b1"]
    mean = jnp.mean(h, axis=-1, keepdims=True)
    var = jnp.mean((h - mean) ** 2, axis=-1, keepdims=True)
    h = (h - mean) / jnp.sqrt(var + _EPS) * p["gamma"] + p["beta"]
    h = jnp.where(h > 0, h, a * h)
    h = h @ p["w2"] + p["b2"]
    h = jnp.where(h > 0, h, a * h)
    return h @ p["w3"] + p["b3"]


if __name__ == "__main__":
    batch, input_size, hidden_size, output_size = 2, 16, 32, 4

    key = jax.random.PRNGKey(0)
    kx, kx2, kp = jax.random.split(key, 3)
    x = jax.random.normal(kx, (batch, input_size), jnp.float32)
    params = init_params(kp, input_size, hidden_size, output_size)
    prepped = prepare_params(params, input_size, hidden_size, output_size)

    # Single-tile run (small batch, full-extent M block).
    out = deep_qnet_forward(prepped, x, hidden_size=hidden_size,
                            output_size=output_size)
    out = jax.block_until_ready(out)
    ref = deep_qnet_reference(params, x)
    assert out.shape == (batch, output_size), out.shape
    err = jnp.max(jnp.abs(out - ref))
    # bf16 matmul operands with f32 accumulation -> relaxed tolerance.
    assert jnp.allclose(out, ref, atol=5e-2, rtol=5e-2), f"max abs err = {err}"

    # Multi-tile run: exercises the M-grid path with a partial last block
    # (M=40, tm=16 -> grid=3, last block has 8 valid rows).
    x_big = jax.random.normal(kx2, (40, input_size), jnp.float32)
    out_big = deep_qnet_forward(prepped, x_big, hidden_size=hidden_size,
                                output_size=output_size, block_m=16)
    out_big = jax.block_until_ready(out_big)
    ref_big = deep_qnet_reference(params, x_big)
    err_big = jnp.max(jnp.abs(out_big - ref_big))
    assert out_big.shape == (40, output_size), out_big.shape
    assert jnp.allclose(out_big, ref_big, atol=5e-2, rtol=5e-2), \
        f"max abs err (tiled) = {err_big}"

    print("KERNEL_OK")
</pallas_src>

<mosaic_0001>
module attributes {stable_mosaic.version = 11 : i64} {
  func.func @_deep_qnet_kernel(%arg0: i32, %arg1: memref<1xf32, #tpu.memory_space<smem>>, %arg2: memref<2x16xf32, #tpu.memory_space<vmem>>, %arg3: memref<16x128xbf16, #tpu.memory_space<vmem>>, %arg4: memref<1x128xf32, #tpu.memory_space<vmem>>, %arg5: memref<1x128xf32, #tpu.memory_space<vmem>>, %arg6: memref<1x128xf32, #tpu.memory_space<vmem>>, %arg7: memref<128x128xbf16, #tpu.memory_space<vmem>>, %arg8: memref<1x128xf32, #tpu.memory_space<vmem>>, %arg9: memref<128x4xbf16, #tpu.memory_space<vmem>>, %arg10: memref<1x4xf32, #tpu.memory_space<vmem>>, %arg11: memref<2x4xf32, #tpu.memory_space<vmem>>) attributes {dimension_semantics = [#tpu.dimension_semantics<parallel>], iteration_bounds = array<i64: 1>, scalar_prefetch = 0 : i64, scratch_operands = 0 : i64, tpu.core_type = #tpu.core_type<tc>, window_params = [{transform_indices = @transform_0, window_bounds = array<i64: 1>}, {transform_indices = @transform_1, window_bounds = array<i64: 2, 16>}, {pipeline_mode = #tpu.pipeline_mode<synchronous>, transform_indices = @transform_2, window_bounds = array<i64: 16, 128>}, {pipeline_mode = #tpu.pipeline_mode<synchronous>, transform_indices = @transform_3, window_bounds = array<i64: 1, 128>}, {pipeline_mode = #tpu.pipeline_mode<synchronous>, transform_indices = @transform_4, window_bounds = array<i64: 1, 128>}, {pipeline_mode = #tpu.pipeline_mode<synchronous>, transform_indices = @transform_5, window_bounds = array<i64: 1, 128>}, {pipeline_mode = #tpu.pipeline_mode<synchronous>, transform_indices = @transform_6, window_bounds = array<i64: 128, 128>}, {pipeline_mode = #tpu.pipeline_mode<synchronous>, transform_indices = @transform_7, window_bounds = array<i64: 1, 128>}, {pipeline_mode = #tpu.pipeline_mode<synchronous>, transform_indices = @transform_8, window_bounds = array<i64: 128, 4>}, {pipeline_mode = #tpu.pipeline_mode<synchronous>, transform_indices = @transform_9, window_bounds = array<i64: 1, 4>}, {transform_indices = @transform_10, window_bounds = array<i64: 2, 4>}]} {
    %c0 = arith.constant 0 : index
    %0 = memref.load %arg1[%c0] : memref<1xf32, #tpu.memory_space<smem>>
    %c0_0 = arith.constant 0 : index
    %c0_1 = arith.constant 0 : index
    %1 = vector.load %arg2[%c0_0, %c0_1] : memref<2x16xf32, #tpu.memory_space<vmem>>, vector<2x16xf32>
    %2 = arith.truncf %1 : vector<2x16xf32> to vector<2x16xbf16>
    %c0_2 = arith.constant 0 : index
    %c0_3 = arith.constant 0 : index
    %3 = vector.load %arg3[%c0_2, %c0_3] : memref<16x128xbf16, #tpu.memory_space<vmem>>, vector<16x128xbf16>
    %cst = arith.constant dense<0.000000e+00> : vector<2x128xf32>
    %4 = tpu.matmul %2, %3, %cst {dimension_numbers = #tpu.dot_dimension_numbers<[1], [0], [0], [1], [0, 0, 1, 1], [], []>} : vector<2x16xbf16>, vector<16x128xbf16>, vector<2x128xf32> -> vector<2x128xf32>
    %c0_4 = arith.constant 0 : index
    %c0_5 = arith.constant 0 : index
    %5 = vector.load %arg4[%c0_4, %c0_5] : memref<1x128xf32, #tpu.memory_space<vmem>>, vector<1x128xf32>
    %6 = vector.broadcast %5 : vector<1x128xf32> to vector<2x128xf32>
    %7 = arith.addf %4, %6 : vector<2x128xf32>
    %cst_6 = arith.constant dense<0.000000e+00> : vector<2xf32>
    %8 = vector.multi_reduction <add>, %7, %cst_6 [1] : vector<2x128xf32> to vector<2xf32>
    %9 = vector.shape_cast %8 : vector<2xf32> to vector<2x1xf32>
    %cst_7 = arith.constant 3.125000e-02 : f32
    %10 = vector.broadcast %cst_7 : f32 to vector<2x1xf32>
    %11 = arith.mulf %9, %10 : vector<2x1xf32>
    %12 = vector.broadcast %11 : vector<2x1xf32> to vector<2x128xf32>
    %13 = arith.subf %7, %12 : vector<2x128xf32>
    %14 = arith.mulf %13, %13 : vector<2x128xf32>
    %cst_8 = arith.constant dense<0.000000e+00> : vector<2xf32>
    %15 = vector.multi_reduction <add>, %14, %cst_8 [1] : vector<2x128xf32> to vector<2xf32>
    %16 = vector.shape_cast %15 : vector<2xf32> to vector<2x1xf32>
    %cst_9 = arith.constant 9.600000e+01 : f32
    %17 = vector.broadcast %cst_9 : f32 to vector<2x1xf32>
    %18 = arith.mulf %17, %11 : vector<2x1xf32>
    %19 = arith.mulf %18, %11 : vector<2x1xf32>
    %20 = arith.subf %16, %19 : vector<2x1xf32>
    %cst_10 = arith.constant 3.125000e-02 : f32
    %21 = vector.broadcast %cst_10 : f32 to vector<2x1xf32>
    %22 = arith.mulf %20, %21 : vector<2x1xf32>
    %cst_11 = arith.constant 9.99999974E-6 : f32
    %23 = vector.broadcast %cst_11 : f32 to vector<2x1xf32>
    %24 = arith.addf %22, %23 : vector<2x1xf32>
    %25 = math.rsqrt %24 : vector<2x1xf32>
    %26 = vector.broadcast %25 : vector<2x1xf32> to vector<2x128xf32>
    %27 = arith.mulf %13, %26 : vector<2x128xf32>
    %c0_12 = arith.constant 0 : index
    %c0_13 = arith.constant 0 : index
    %28 = vector.load %arg5[%c0_12, %c0_13] : memref<1x128xf32, #tpu.memory_space<vmem>>, vector<1x128xf32>
    %29 = vector.broadcast %28 : vector<1x128xf32> to vector<2x128xf32>
    %30 = arith.mulf %27, %29 : vector<2x128xf32>
    %c0_14 = arith.constant 0 : index
    %c0_15 = arith.constant 0 : index
    %31 = vector.load %arg6[%c0_14, %c0_15] : memref<1x128xf32, #tpu.memory_space<vmem>>, vector<1x128xf32>
    %32 = vector.broadcast %31 : vector<1x128xf32> to vector<2x128xf32>
    %33 = arith.addf %30, %32 : vector<2x128xf32>
    %cst_16 = arith.constant 0.000000e+00 : f32
    %34 = vector.broadcast %cst_16 : f32 to vector<2x128xf32>
    %35 = arith.cmpf ogt, %33, %34 : vector<2x128xf32>
    %36 = vector.broadcast %0 : f32 to vector<2x128xf32>
    %37 = arith.mulf %36, %33 : vector<2x128xf32>
    %38 = arith.select %35, %33, %37 : vector<2x128xi1>, vector<2x128xf32>
    %39 = arith.truncf %38 : vector<2x128xf32> to vector<2x128xbf16>
    %c0_17 = arith.constant 0 : index
    %c0_18 = arith.constant 0 : index
    %40 = vector.load %arg7[%c0_17, %c0_18] : memref<128x128xbf16, #tpu.memory_space<vmem>>, vector<128x128xbf16>
    %cst_19 = arith.constant dense<0.000000e+00> : vector<2x128xf32>
    %41 = tpu.matmul %39, %40, %cst_19 {dimension_numbers = #tpu.dot_dimension_numbers<[1], [0], [0], [1], [0, 0, 1, 1], [], []>} : vector<2x128xbf16>, vector<128x128xbf16>, vector<2x128xf32> -> vector<2x128xf32>
    %c0_20 = arith.constant 0 : index
    %c0_21 = arith.constant 0 : index
    %42 = vector.load %arg8[%c0_20, %c0_21] : memref<1x128xf32, #tpu.memory_space<vmem>>, vector<1x128xf32>
    %43 = vector.broadcast %42 : vector<1x128xf32> to vector<2x128xf32>
    %44 = arith.addf %41, %43 : vector<2x128xf32>
    %cst_22 = arith.constant 0.000000e+00 : f32
    %45 = vector.broadcast %cst_22 : f32 to vector<2x128xf32>
    %46 = arith.cmpf ogt, %44, %45 : vector<2x128xf32>
    %47 = vector.broadcast %0 : f32 to vector<2x128xf32>
    %48 = arith.mulf %47, %44 : vector<2x128xf32>
    %49 = arith.select %46, %44, %48 : vector<2x128xi1>, vector<2x128xf32>
    %50 = arith.truncf %49 : vector<2x128xf32> to vector<2x128xbf16>
    %c0_23 = arith.constant 0 : index
    %c0_24 = arith.constant 0 : index
    %51 = vector.load %arg9[%c0_23, %c0_24] : memref<128x4xbf16, #tpu.memory_space<vmem>>, vector<128x4xbf16>
    %cst_25 = arith.constant dense<0.000000e+00> : vector<2x4xf32>
    %52 = tpu.matmul %50, %51, %cst_25 {dimension_numbers = #tpu.dot_dimension_numbers<[1], [0], [0], [1], [0, 0, 1, 1], [], []>} : vector<2x128xbf16>, vector<128x4xbf16>, vector<2x4xf32> -> vector<2x4xf32>
    %c0_26 = arith.constant 0 : index
    %c0_27 = arith.constant 0 : index
    %53 = vector.load %arg10[%c0_26, %c0_27] : memref<1x4xf32, #tpu.memory_space<vmem>>, vector<1x4xf32>
    %54 = vector.broadcast %53 : vector<1x4xf32> to vector<2x4xf32>
    %55 = arith.addf %52, %54 : vector<2x4xf32>
    %c0_28 = arith.constant 0 : index
    %c0_29 = arith.constant 0 : index
    %56 = vector.load %arg11[%c0_28, %c0_29] : memref<2x4xf32, #tpu.memory_space<vmem>>, vector<2x4xf32>
    tpu.vector_store %arg11[%c0_28, %c0_29], %55 {strides = array<i32>} : memref<2x4xf32, #tpu.memory_space<vmem>>, vector<2x4xf32>,
    return
  }
  func.func @transform_0(%arg0: i32) -> i32 {
    %c0_i32 = arith.constant 0 : i32
    %c0_i32_0 = arith.constant 0 : i32
    return %c0_i32 : i32
  }
  func.func @transform_1(%arg0: i32) -> (i32, i32) {
    %c0_i32 = arith.constant 0 : i32
    %c0_i32_0 = arith.constant 0 : i32
    return %arg0, %c0_i32 : i32, i32
  }
  func.func @transform_2(%arg0: i32) -> (i32, i32) {
    %c0_i32 = arith.constant 0 : i32
    %c0_i32_0 = arith.constant 0 : i32
    %c0_i32_1 = arith.constant 0 : i32
    return %c0_i32, %c0_i32_0 : i32, i32
  }
  func.func @transform_3(%arg0: i32) -> (i32, i32) {
    %c0_i32 = arith.constant 0 : i32
    %c0_i32_0 = arith.constant 0 : i32
    %c0_i32_1 = arith.constant 0 : i32
    return %c0_i32, %c0_i32_0 : i32, i32
  }
  func.func @transform_4(%arg0: i32) -> (i32, i32) {
    %c0_i32 = arith.constant 0 : i32
    %c0_i32_0 = arith.constant 0 : i32
    %c0_i32_1 = arith.constant 0 : i32
    return %c0_i32, %c0_i32_0 : i32, i32
  }
  func.func @transform_5(%arg0: i32) -> (i32, i32) {
    %c0_i32 = arith.constant 0 : i32
    %c0_i32_0 = arith.constant 0 : i32
    %c0_i32_1 = arith.constant 0 : i32
    return %c0_i32, %c0_i32_0 : i32, i32
  }
  func.func @transform_6(%arg0: i32) -> (i32, i32) {
    %c0_i32 = arith.constant 0 : i32
    %c0_i32_0 = arith.constant 0 : i32
    %c0_i32_1 = arith.constant 0 : i32
    return %c0_i32, %c0_i32_0 : i32, i32
  }
  func.func @transform_7(%arg0: i32) -> (i32, i32) {
    %c0_i32 = arith.constant 0 : i32
    %c0_i32_0 = arith.constant 0 : i32
    %c0_i32_1 = arith.constant 0 : i32
    return %c0_i32, %c0_i32_0 : i32, i32
  }
  func.func @transform_8(%arg0: i32) -> (i32, i32) {
    %c0_i32 = arith.constant 0 : i32
    %c0_i32_0 = arith.constant 0 : i32
    %c0_i32_1 = arith.constant 0 : i32
    return %c0_i32, %c0_i32_0 : i32, i32
  }
  func.func @transform_9(%arg0: i32) -> (i32, i32) {
    %c0_i32 = arith.constant 0 : i32
    %c0_i32_0 = arith.constant 0 : i32
    %c0_i32_1 = arith.constant 0 : i32
    return %c0_i32, %c0_i32_0 : i32, i32
  }
  func.func @transform_10(%arg0: i32) -> (i32, i32) {
    %c0_i32 = arith.constant 0 : i32
    %c0_i32_0 = arith.constant 0 : i32
    return %arg0, %c0_i32 : i32, i32
  }
}

</mosaic_0001>

<llo_original>
// kernel: deep_qnet_forward.1
$region0: #{deep_qnet_forward.1}
  #allocation0 [shape = 'u32[]', space=smem, size = 0x4, offset = 0x4, fixed_abs, tag = 'smem constant byte address 0x4 - core index']
  #allocation1 [shape = 'u32[144,128]{1,0:T(1,128)}', space=vmem, size = 0x12000, scoped, tag = 'internal scratch']
  #allocation2 [shape = 'f32[1]{0:T(128)S(6)}', space=smem, size = 0x200, scoped, tag = 'scoped memory for deep_qnet_forward.1']
  %s0 = inlined_call_operand.<no memory space> [shape: f32[1], index: 0, kind: input, shape index: {}]
  %s1 = inlined_call_operand.vmem [shape: f32[2,16], index: 1, kind: input, shape index: {}]
  %s2 = inlined_call_operand.vmem [shape: bf16[16,128], index: 2, kind: input, shape index: {}]
  %s3 = inlined_call_operand.vmem [shape: f32[1,128], index: 3, kind: input, shape index: {}]
  %s4 = inlined_call_operand.vmem [shape: f32[1,128], index: 4, kind: input, shape index: {}]
  %s5 = inlined_call_operand.vmem [shape: f32[1,128], index: 5, kind: input, shape index: {}]
  %s6 = inlined_call_operand.vmem [shape: bf16[128,128], index: 6, kind: input, shape index: {}]
  %s7 = inlined_call_operand.vmem [shape: f32[1,128], index: 7, kind: input, shape index: {}]
  %s8 = inlined_call_operand.vmem [shape: bf16[128,4], index: 8, kind: input, shape index: {}]
  %s9 = inlined_call_operand.hbm [shape: f32[1,4], index: 9, kind: input, shape index: {}]
  %s10 = inlined_call_operand.hbm [shape: f32[2,4], index: 10, kind: output, shape index: {}]
  %s11 = sld [smem:[#allocation0]]
  $region54: #{deep_qnet_forward.1} parent=0
    _
  %s13 = ssub.s32 1, %s11
  %s14 = scalar_select 0, %s13, %s11
  %15 = sst [smem:[#allocation2]] %s0
  $region1: #{deep_qnet_forward.1} parent=0
    #allocation3 [shape = 'u8[512]{0}', space=vmem, size = 0x400, scoped, tag = 'input window, operand 9, single buffered']
    #allocation4 [shape = 's32[1]{0}', space=sflag, size = 0x4, scoped, tag = 'scoped memory for deep_qnet_forward.1']
    #allocation5 [shape = 's32[1]{0}', space=sflag, size = 0x4, scoped, tag = 'scoped memory for deep_qnet_forward.1']
    #allocation6 [shape = 'u8[1024]{0}', space=vmem, size = 0x400, scoped, tag = 'output window, operand 0, single buffered']
    %16 = vsyncpa [#allocation4], 0
    %17 = vsyncpa [#allocation5], 0
    // Predicated region
    $region2: #{deep_qnet_forward.1} parent=1 // pred_check
      _
    $region3: #{deep_qnet_forward.1} parent=1 // pred_check_branch
      %19 = sbr.rel (0) target = $region5
    $region4: #{deep_qnet_forward.1} parent=1 // pred_region
      _
    $region5: #{deep_qnet_forward.1} parent=1 // pred_fallthru
      _
    // Predicated region
    $region6: #{deep_qnet_forward.1} parent=1 // pred_check
      _
    $region7: #{deep_qnet_forward.1} parent=1 // pred_check_branch
      %21 = sbr.rel (0) target = $region9
    $region8: #{deep_qnet_forward.1} parent=1 // pred_region
      _
    $region9: #{deep_qnet_forward.1} parent=1 // pred_fallthru
      _
    // Predicated region
    $region10: #{deep_qnet_forward.1} parent=1 // pred_check
      _
    $region11: #{deep_qnet_forward.1} parent=1 // pred_check_branch
      %23 = sbr.rel (0) target = $region13
    $region12: #{deep_qnet_forward.1} parent=1 // pred_region
      _
    $region13: #{deep_qnet_forward.1} parent=1 // pred_fallthru
      _
    // Predicated region
    $region14: #{deep_qnet_forward.1} parent=1 // pred_check
      _
    $region15: #{deep_qnet_forward.1} parent=1 // pred_check_branch
      %25 = sbr.rel (0) target = $region17
    $region16: #{deep_qnet_forward.1} parent=1 // pred_region
      _
    $region17: #{deep_qnet_forward.1} parent=1 // pred_fallthru
      _
    // Predicated region
    $region18: #{deep_qnet_forward.1} parent=1 // pred_check
      _
    $region19: #{deep_qnet_forward.1} parent=1 // pred_check_branch
      %27 = sbr.rel (0) target = $region21
    $region20: #{deep_qnet_forward.1} parent=1 // pred_region
      _
    $region21: #{deep_qnet_forward.1} parent=1 // pred_fallthru
      _
    // Predicated region
    $region22: #{deep_qnet_forward.1} parent=1 // pred_check
      _
    $region23: #{deep_qnet_forward.1} parent=1 // pred_check_branch
      %29 = sbr.rel (0) target = $region25
    $region24: #{deep_qnet_forward.1} parent=1 // pred_region
      _
    $region25: #{deep_qnet_forward.1} parent=1 // pred_fallthru
      _
    // Predicated region
    $region26: #{deep_qnet_forward.1} parent=1 // pred_check
      _
    $region27: #{deep_qnet_forward.1} parent=1 // pred_check_branch
      %31 = sbr.rel (0) target = $region29
    $region28: #{deep_qnet_forward.1} parent=1 // pred_region
      _
    $region29: #{deep_qnet_forward.1} parent=1 // pred_fallthru
      _
    // Predicated region
    $region30: #{deep_qnet_forward.1} parent=1 // pred_check
      _
    $region31: #{deep_qnet_forward.1} parent=1 // pred_check_branch
      %33 = sbr.rel (0) target = $region33
    $region32: #{deep_qnet_forward.1} parent=1 // pred_region
      _
    $region33: #{deep_qnet_forward.1} parent=1 // pred_fallthru
      _
    // Predicated region
    $region34: #{deep_qnet_forward.1} parent=1 // pred_check
      _
    $region35: #{deep_qnet_forward.1} parent=1 // pred_check_branch
      %35 = sbr.rel (0) target = $region37
    $region36: #{deep_qnet_forward.1} parent=1 // pred_region
      _
    $region37: #{deep_qnet_forward.1} parent=1 // pred_fallthru
      _
    // Predicated region
    $region38: #{deep_qnet_forward.1} parent=1 // pred_check
      _
    $region39: #{deep_qnet_forward.1} parent=1 // pred_check_branch
      %37 = sbr.rel (0) target = $region41
    $region40: #{deep_qnet_forward.1} parent=1 // pred_region
      %s39 = ssub.s32 16, 16
      %40 = vsyncadd [#allocation4], %s39
      %s42 = sshll.u32 [#allocation3], 4
      %s43 = int_to_ptr.vmem [resolvable:$true] %s42
      %45 = dma.hbm_to_vmem [thread:$0]  %s9, 16, %s43, [#allocation4]
    $region41: #{deep_qnet_forward.1} parent=1 // pred_fallthru
      _
    // Predicated region
    $region42: #{deep_qnet_forward.1} parent=1 // pred_check
      _
    $region43: #{deep_qnet_forward.1} parent=1 // pred_check_branch
      %47 = sbr.rel (0) target = $region45
    $region44: #{deep_qnet_forward.1} parent=1 // pred_region
      %48 = dma.done [#allocation4], 16
    $region45: #{deep_qnet_forward.1} parent=1 // pred_fallthru
      _
    %s50 = sld [smem:[#allocation2]]
    %v51 = vld [vmem:[%s1] sm:$0x3]
    %v52 = vpack.c.bf16 %v51, %v51
    %v53 = vld [vmem:[%s2] sm:$0xf]
    %v54 = vld [vmem:[%s2 + $0x4] sm:$0xf]
    %v55 = vld [vmem:[%s3] sm:$0x1]
    %v57 = vlaneseq
    %v58 = vshrl.u32 %v57, 7
    %v59 = vsub.s32 0, %v58
    %v60 = vrot.slane %v55, %v59
    %v64 = vunpack.c.l.b16 %v53
    %v65 = vunpack.c.l.b16 %v54
    %v66 = vpack.c.b16 %v65, %v64
    %vm68 = vcmask 130048
    %v70 = vsel %vm68, %v52, 0
    %72 = vmatprep.subr.bf16.mxu0 0
    %73 = vmatpush1.bf16.msra.mxu0 0
    %74 = vmatprep.subr.bf16.mxu0 0
    %75 = vmatpush1.bf16.msra.mxu0 0
    %76 = vmatprep.subr.bf16.mxu0 0
    %77 = vmatpush1.bf16.msra.mxu0 0
    %78 = vmatprep.subr.bf16.mxu0 0
    %79 = vmatpush1.bf16.msra.mxu0 0
    %80 = vmatprep.subr.bf16.mxu0 0
    %81 = vmatpush1.bf16.msra.mxu0 0
    %82 = vmatprep.subr.bf16.mxu0 0
    %83 = vmatpush1.bf16.msra.mxu0 0
    %84 = vmatprep.subr.bf16.mxu0 0
    %85 = vmatpush1.bf16.msra.mxu0 0
    %86 = vmatprep.subr.bf16.mxu0 0
    %87 = vmatpush1.bf16.msra.mxu0 %v66
    %88 = vmatprep.subr.bf16.mxu0 0
    %89 = vmatpush2.bf16.msra.mxu0 0
    %90 = vmatprep.subr.bf16.mxu0 0
    %91 = vmatpush2.bf16.msra.mxu0 0
    %92 = vmatprep.subr.bf16.mxu0 0
    %93 = vmatpush2.bf16.msra.mxu0 0
    %94 = vmatprep.subr.bf16.mxu0 0
    %95 = vmatpush2.bf16.msra.mxu0 0
    %96 = vmatprep.subr.bf16.mxu0 0
    %97 = vmatpush2.bf16.msra.mxu0 0
    %98 = vmatprep.subr.bf16.mxu0 0
    %99 = vmatpush2.bf16.msra.mxu0 0
    %100 = vmatprep.subr.bf16.mxu0 0
    %101 = vmatpush2.bf16.msra.mxu0 0
    %102 = vmatprep.subr.bf16.mxu0 0
    %103 = vmatpush2.bf16.msra.mxu0 0
    %104 = vmatprep.mubr.bf16.mxu0 0
    %105 = vmatmul.mubr.bf16.gmra.mxu0 %v70
    %v106 = vpop.f32.mrf.mxu0
    %v107 = vadd.f32 %v60, %v106
    %v108 = vpop.f32.mrf.mxu0
    %v109 = vpop.f32.mrf.mxu0
    %v110 = vpop.f32.mrf.mxu0
    %111 = vdwg.mxu0
    %vm112 = vcmask 1041408
    %v113 = vsel %vm112, %v107, 0.0
    %114 = vadd.xlane.f32.xlu0 %v113
    %v115 = vpop.xlane.xlu0 %114
    %v116 = vmul.f32 %v115, 0.03125
    %v117 = vsub.f32 %v107, %v116
    %v118 = vmul.f32 %v117, %v117
    %v119 = vsel %vm112, %v118, 0.0
    %120 = vadd.xlane.f32.xlu0 %v119
    %v121 = vpop.xlane.xlu0 %120
    %v122 = vmul.f32 %v116, 96.0
    %v123 = vmul.f32 %v122, %v116
    %v124 = vsub.f32 %v121, %v123
    %v125 = vmul.f32 %v124, 0.03125
    %v126 = vadd.f32 %v125, 1e-05
    %v127 = vrsqrt.pop %v126
    %v128 = vmul.f32 %v117, %v127
    %v129 = vld [vmem:[%s4] sm:$0x1]
    %v131 = vlaneseq
    %v132 = vshrl.u32 %v131, 7
    %v133 = vsub.s32 0, %v132
    %v134 = vrot.slane %v129, %v133
    %v136 = vmul.f32 %v128, %v134
    %v137 = vld [vmem:[%s5] sm:$0x1]
    %v139 = vlaneseq
    %v140 = vshrl.u32 %v139, 7
    %v141 = vsub.s32 0, %v140
    %v142 = vrot.slane %v137, %v141
    %v144 = vadd.f32 %v136, %v142
    %vm145 = vcmp.gt.f32.partialorder %v144, 0.0
    %v146 = vstv %s50
    %v147 = vmul.f32 %v146, %v144
    %v148 = vsel %vm145, %v144, %v147
    %v149 = vpack.c.bf16 %v148, %v148
    %v150 = vld [vmem:[%s6] sm:$0xf]
    %v151 = vld [vmem:[%s6 + $0x4] sm:$0xf]
    %v152 = vld [vmem:[%s6 + $0x8] sm:$0xf]
    %v153 = vld [vmem:[%s6 + $0xc] sm:$0xf]
    %v154 = vld [vmem:[%s6 + $0x10] sm:$0xf]
    %v155 = vld [vmem:[%s6 + $0x14] sm:$0xf]
    %v156 = vld [vmem:[%s6 + $0x18] sm:$0xf]
    %v157 = vld [vmem:[%s6 + $0x1c] sm:$0xf]
    %v158 = vld [vmem:[%s6 + $0x20] sm:$0xf]
    %v159 = vld [vmem:[%s6 + $0x24] sm:$0xf]
    %v160 = vld [vmem:[%s6 + $0x28] sm:$0xf]
    %v161 = vld [vmem:[%s6 + $0x2c] sm:$0xf]
    %v162 = vld [vmem:[%s6 + $0x30] sm:$0xf]
    %v163 = vld [vmem:[%s6 + $0x34] sm:$0xf]
    %v164 = vld [vmem:[%s6 + $0x38] sm:$0xf]
    %v165 = vld [vmem:[%s6 + $0x3c] sm:$0xf]
    %v166 = vld [vmem:[%s7] sm:$0x1]
    %v168 = vlaneseq
    %v169 = vshrl.u32 %v168, 7
    %v170 = vsub.s32 0, %v169
    %v171 = vrot.slane %v166, %v170
    %v189 = vunpack.c.l.b16 %v150
    %v190 = vunpack.c.l.b16 %v151
    %v191 = vunpack.c.l.b16 %v152
    %v192 = vunpack.c.l.b16 %v153
    %v193 = vunpack.c.l.b16 %v154
    %v194 = vunpack.c.l.b16 %v155
    %v195 = vunpack.c.l.b16 %v156
    %v196 = vunpack.c.l.b16 %v157
    %v197 = vunpack.c.l.b16 %v158
    %v198 = vunpack.c.l.b16 %v159
    %v199 = vunpack.c.l.b16 %v160
    %v200 = vunpack.c.l.b16 %v161
    %v201 = vunpack.c.l.b16 %v162
    %v202 = vunpack.c.l.b16 %v163
    %v203 = vunpack.c.l.b16 %v164
    %v204 = vunpack.c.l.b16 %v165
    %v205 = vpack.c.b16 %v190, %v189
    %v206 = vpack.c.b16 %v192, %v191
    %v207 = vpack.c.b16 %v194, %v193
    %v208 = vpack.c.b16 %v196, %v195
    %v209 = vpack.c.b16 %v198, %v197
    %v210 = vpack.c.b16 %v200, %v199
    %v211 = vpack.c.b16 %v202, %v201
    %v212 = vpack.c.b16 %v204, %v203
    %221 = vmatprep.subr.bf16.mxu0 0
    %222 = vmatpush1.bf16.msra.mxu0 %v212
    %223 = vmatprep.subr.bf16.mxu0 0
    %224 = vmatpush1.bf16.msra.mxu0 %v211
    %225 = vmatprep.subr.bf16.mxu0 0
    %226 = vmatpush1.bf16.msra.mxu0 %v210
    %227 = vmatprep.subr.bf16.mxu0 0
    %228 = vmatpush1.bf16.msra.mxu0 %v209
    %229 = vmatprep.subr.bf16.mxu0 0
    %230 = vmatpush1.bf16.msra.mxu0 %v208
    %231 = vmatprep.subr.bf16.mxu0 0
    %232 = vmatpush1.bf16.msra.mxu0 %v207
    %233 = vmatprep.subr.bf16.mxu0 0
    %234 = vmatpush1.bf16.msra.mxu0 %v206
    %235 = vmatprep.subr.bf16.mxu0 0
    %236 = vmatpush1.bf16.msra.mxu0 %v205
    %237 = vmatprep.subr.bf16.mxu0 0
    %238 = vmatpush2.bf16.msra.mxu0 0
    %239 = vmatprep.subr.bf16.mxu0 0
    %240 = vmatpush2.bf16.msra.mxu0 0
    %241 = vmatprep.subr.bf16.mxu0 0
    %242 = vmatpush2.bf16.msra.mxu0 0
    %243 = vmatprep.subr.bf16.mxu0 0
    %244 = vmatpush2.bf16.msra.mxu0 0
    %245 = vmatprep.subr.bf16.mxu0 0
    %246 = vmatpush2.bf16.msra.mxu0 0
    %247 = vmatprep.subr.bf16.mxu0 0
    %248 = vmatpush2.bf16.msra.mxu0 0
    %249 = vmatprep.subr.bf16.mxu0 0
    %250 = vmatpush2.bf16.msra.mxu0 0
    %251 = vmatprep.subr.bf16.mxu0 0
    %252 = vmatpush2.bf16.msra.mxu0 0
    %253 = vmatprep.mubr.bf16.mxu0 0
    %254 = vmatmul.mubr.bf16.gmra.mxu0 %v149
    %v255 = vpop.f32.mrf.mxu0
    %v256 = vadd.f32 %v171, %v255
    %v257 = vpop.f32.mrf.mxu0
    %v258 = vpop.f32.mrf.mxu0
    %v259 = vpop.f32.mrf.mxu0
    %260 = vdwg.mxu0
    %vm261 = vcmp.gt.f32.partialorder %v256, 0.0
    %v262 = vmul.f32 %v146, %v256
    %v263 = vsel %vm261, %v256, %v262
    %v264 = vpack.c.bf16 %v263, %v263
    %v265 = vld [vmem:[%s8] sm:$0xf]
    %v266 = vld [vmem:[%s8 + $0x4] sm:$0xf]
    %v267 = vld [vmem:[%s8 + $0x8] sm:$0xf]
    %v268 = vld [vmem:[%s8 + $0xc] sm:$0xf]
    %v269 = vld [vmem:[%s8 + $0x10] sm:$0xf]
    %v270 = vld [vmem:[%s8 + $0x14] sm:$0xf]
    %v271 = vld [vmem:[%s8 + $0x18] sm:$0xf]
    %v272 = vld [vmem:[%s8 + $0x1c] sm:$0xf]
    %v273 = vld [vmem:[%s8 + $0x20] sm:$0xf]
    %v274 = vld [vmem:[%s8 + $0x24] sm:$0xf]
    %v275 = vld [vmem:[%s8 + $0x28] sm:$0xf]
    %v276 = vld [vmem:[%s8 + $0x2c] sm:$0xf]
    %v277 = vld [vmem:[%s8 + $0x30] sm:$0xf]
    %v278 = vld [vmem:[%s8 + $0x34] sm:$0xf]
    %v279 = vld [vmem:[%s8 + $0x38] sm:$0xf]
    %v280 = vld [vmem:[%s8 + $0x3c] sm:$0xf]
    %v281 = vld [vmem:[#allocation3] sm:$0x1]
    %v283 = vlaneseq
    %v284 = vshrl.u32 %v283, 7
    %v285 = vsub.s32 0, %v284
    %v286 = vrot.slane %v281, %v285
    %v304 = vunpack.c.l.b16 %v265
    %v305 = vunpack.c.l.b16 %v266
    %v306 = vunpack.c.l.b16 %v267
    %v307 = vunpack.c.l.b16 %v268
    %v308 = vunpack.c.l.b16 %v269
    %v309 = vunpack.c.l.b16 %v270
    %v310 = vunpack.c.l.b16 %v271
    %v311 = vunpack.c.l.b16 %v272
    %v312 = vunpack.c.l.b16 %v273
    %v313 = vunpack.c.l.b16 %v274
    %v314 = vunpack.c.l.b16 %v275
    %v315 = vunpack.c.l.b16 %v276
    %v316 = vunpack.c.l.b16 %v277
    %v317 = vunpack.c.l.b16 %v278
    %v318 = vunpack.c.l.b16 %v279
    %v319 = vunpack.c.l.b16 %v280
    %v320 = vpack.c.b16 %v305, %v304
    %v321 = vpack.c.b16 %v307, %v306
    %v322 = vpack.c.b16 %v309, %v308
    %v323 = vpack.c.b16 %v311, %v310
    %v324 = vpack.c.b16 %v313, %v312
    %v325 = vpack.c.b16 %v315, %v314
    %v326 = vpack.c.b16 %v317, %v316
    %v327 = vpack.c.b16 %v319, %v318
    %336 = vmatprep.subr.bf16.mxu0 0
    %337 = vmatpush1.bf16.msra.mxu0 %v327
    %338 = vmatprep.subr.bf16.mxu0 0
    %339 = vmatpush1.bf16.msra.mxu0 %v326
    %340 = vmatprep.subr.bf16.mxu0 0
    %341 = vmatpush1.bf16.msra.mxu0 %v325
    %342 = vmatprep.subr.bf16.mxu0 0
    %343 = vmatpush1.bf16.msra.mxu0 %v324
    %344 = vmatprep.subr.bf16.mxu0 0
    %345 = vmatpush1.bf16.msra.mxu0 %v323
    %346 = vmatprep.subr.bf16.mxu0 0
    %347 = vmatpush1.bf16.msra.mxu0 %v322
    %348 = vmatprep.subr.bf16.mxu0 0
    %349 = vmatpush1.bf16.msra.mxu0 %v321
    %350 = vmatprep.subr.bf16.mxu0 0
    %351 = vmatpush1.bf16.msra.mxu0 %v320
    %352 = vmatprep.subr.bf16.mxu0 0
    %353 = vmatpush2.bf16.msra.mxu0 0
    %354 = vmatprep.subr.bf16.mxu0 0
    %355 = vmatpush2.bf16.msra.mxu0 0
    %356 = vmatprep.subr.bf16.mxu0 0
    %357 = vmatpush2.bf16.msra.mxu0 0
    %358 = vmatprep.subr.bf16.mxu0 0
    %359 = vmatpush2.bf16.msra.mxu0 0
    %360 = vmatprep.subr.bf16.mxu0 0
    %361 = vmatpush2.bf16.msra.mxu0 0
    %362 = vmatprep.subr.bf16.mxu0 0
    %363 = vmatpush2.bf16.msra.mxu0 0
    %364 = vmatprep.subr.bf16.mxu0 0
    %365 = vmatpush2.bf16.msra.mxu0 0
    %366 = vmatprep.subr.bf16.mxu0 0
    %367 = vmatpush2.bf16.msra.mxu0 0
    %368 = vmatprep.mubr.bf16.mxu0 0
    %369 = vmatmul.mubr.bf16.gmra.mxu0 %v264
    %v370 = vpop.f32.mrf.mxu0
    %v371 = vadd.f32 %v286, %v370
    %v372 = vpop.f32.mrf.mxu0
    %v373 = vpop.f32.mrf.mxu0
    %v374 = vpop.f32.mrf.mxu0
    %375 = vdwg.mxu0
    %vm376 = vcmask 25600
    %377 = vst.msk [vmem:[#allocation6] sm:$0x3] %vm376, %v371
    // Predicated region
    $region46: #{deep_qnet_forward.1} parent=1 // pred_check
      _
    $region47: #{deep_qnet_forward.1} parent=1 // pred_check_branch
      %379 = sbr.rel (0) target = $region49
    $region48: #{deep_qnet_forward.1} parent=1 // pred_region
      %s381 = ssub.s32 32, 32
      %382 = vsyncadd [#allocation5], %s381
      %s384 = sshll.u32 [#allocation6], 4
      %s385 = int_to_ptr.vmem [resolvable:$true] %s384
      %387 = dma.vmem_to_hbm [thread:$0]  %s385, 32, %s10, [#allocation5]
    $region49: #{deep_qnet_forward.1} parent=1 // pred_fallthru
      _
    // Predicated region
    $region50: #{deep_qnet_forward.1} parent=1 // pred_check
      _
    $region51: #{deep_qnet_forward.1} parent=1 // pred_check_branch
      %389 = sbr.rel (0) target = $region53
    $region52: #{deep_qnet_forward.1} parent=1 // pred_region
      %390 = dma.done [#allocation5], 32
    $region53: #{deep_qnet_forward.1} parent=1 // pred_fallthru
      _
    %391 = vsyncpa [#allocation4], 1
    %392 = vsyncpa [#allocation5], 1

</llo_original>
